<compile_context>
chip_gen: v7x
topology: tpu7x:2x2x1
jax: 0.10.0
libtpu: 0.0.40
codegen_flags: <defaults>
</compile_context>

<pallas_src>
import math
from functools import partial

import jax
import jax.numpy as jnp
from jax.experimental import pallas as pl
from jax.experimental.pallas import tpu as pltpu

# ----------------------- small synthetic config -----------------------------
DIM = 32          # args.dim
N_HEADS = 4       # args.n_heads
HEAD_DIM = DIM // N_HEADS
SEQLEN = 8        # seqlen (> 1, so mask is applied)
MAX_SEQ_LEN = 8   # args.max_seq_len
START_POS = 0
ROPE_THETA = 10000.0


# ----------------------------- Pallas kernel --------------------------------
def _attention_kernel(x_ref, wqkv_ref, wo_ref, cos_ref, sin_ref,
                      o_ref, qkv_ref, *, n_heads, head_dim, seqlen):
    """Full attention forward for one (seqlen, dim) input, all in VMEM.

    wqkv_ref is the host-fused (D, 5D) weight:
        [ Wq*scale | Wk | Wv | (Wq*scale)@rot | Wk@rot ]
    so RoPE's pair rotation ((q0,q1) -> (-q1,q0)) and the 1/sqrt(hd) scale are
    already baked into the single fused matmul below.
    """
    D = n_heads * head_dim
    x = x_ref[...]

    # One wide MXU push: (S, D) @ (D, 5D) -> (S, 5D)
    big = jnp.dot(x, wqkv_ref[...], preferred_element_type=jnp.float32)

    cos = cos_ref[...]
    sin = sin_ref[...]
    q = big[:, 0 * D:1 * D] * cos + big[:, 3 * D:4 * D] * sin   # RoPE(q)*scale
    k = big[:, 1 * D:2 * D] * cos + big[:, 4 * D:5 * D] * sin   # RoPE(k)
    v = big[:, 2 * D:3 * D]

    # Causal mask built in-kernel (start_pos == 0): position j attends to <= j.
    row = jax.lax.broadcasted_iota(jnp.int32, (seqlen, seqlen), 0)
    col = jax.lax.broadcasted_iota(jnp.int32, (seqlen, seqlen), 1)
    causal = col <= row

    # Per-head attention (static Python loop; n_heads is small and static).
    # Head results go straight into the VMEM scratch slab (no lane concat).
    for h in range(n_heads):
        lo = h * head_dim
        hi = lo + head_dim
        qh = q[:, lo:hi]
        kh = k[:, lo:hi]
        vh = v[:, lo:hi]

        score = jnp.dot(qh, kh.T, preferred_element_type=jnp.float32)
        score = jnp.where(causal, score, -jnp.inf)
        # numerically-stable softmax (same result as F.softmax)
        score = score - jnp.max(score, axis=-1, keepdims=True)
        e = jnp.exp(score)
        p = e * pl.reciprocal(jnp.sum(e, axis=-1, keepdims=True), approx=True)
        qkv_ref[:, lo:hi] = jnp.dot(p, vh, preferred_element_type=jnp.float32)

    o_ref[...] = jnp.dot(qkv_ref[...], wo_ref[...],
                         preferred_element_type=jnp.float32)


# ------------------------- host-side helper setup ---------------------------
def make_rope_tables(seqlen, start_pos, n_heads, head_dim, theta=ROPE_THETA):
    """cos/sin of shape (S, n_heads*head_dim), interleaved per (even,odd) pair."""
    m = jnp.arange(0, head_dim, 2, dtype=jnp.float32)        # (hd/2,)
    freqs = 1.0 / (theta ** (m / head_dim))
    t = jnp.arange(start_pos, start_pos + seqlen, dtype=jnp.float32)
    ang = jnp.outer(t, freqs)                                 # (S, hd/2)
    cos = jnp.cos(ang)
    sin = jnp.sin(ang)
    # tile across heads, then duplicate each entry for the (even, odd) pair
    cos_full = jnp.repeat(jnp.tile(cos, (1, n_heads)), 2, axis=1)   # (S, D)
    sin_full = jnp.repeat(jnp.tile(sin, (1, n_heads)), 2, axis=1)   # (S, D)
    return cos_full.astype(jnp.float32), sin_full.astype(jnp.float32)


def make_rot_matrix(dim):
    """(D, D) matrix R with (q @ R)[:, 2m] = -q[:, 2m+1], (q @ R)[:, 2m+1] = q[:, 2m]."""
    R = jnp.zeros((dim, dim), dtype=jnp.float32)
    even = jnp.arange(0, dim, 2)
    odd = even + 1
    R = R.at[odd, even].set(-1.0)
    R = R.at[even, odd].set(1.0)
    return R


def attention_forward(x, wq, wk, wv, wo, *, n_heads, head_dim,
                      start_pos=0, theta=ROPE_THETA):
    S, D = x.shape
    scale = 1.0 / math.sqrt(head_dim)
    rot = make_rot_matrix(D)
    cos_full, sin_full = make_rope_tables(S, start_pos, n_heads, head_dim, theta)

    # Host-side fusion: QKV + RoPE rotation + query scaling in one weight.
    wqkv = jnp.concatenate(
        [wq * scale, wk, wv, (wq * scale) @ rot, wk @ rot], axis=1
    ).astype(jnp.float32)                                      # (D, 5D)

    kernel = partial(_attention_kernel, n_heads=n_heads,
                     head_dim=head_dim, seqlen=S)
    vmem = pl.BlockSpec(memory_space=pltpu.MemorySpace.VMEM)
    return pl.pallas_call(
        kernel,
        out_shape=jax.ShapeDtypeStruct((S, D), jnp.float32),
        in_specs=[vmem] * 5,
        out_specs=vmem,
        scratch_shapes=[pltpu.VMEM((S, D), jnp.float32)],
    )(x, wqkv, wo, cos_full, sin_full)


def reference_forward(x, wq, wk, wv, wo, cos_full, sin_full, rot, mask,
                      n_heads, head_dim):
    """Pure-JAX reference (same math as the PyTorch module, start_pos=0)."""
    q = x @ wq
    k = x @ wk
    v = x @ wv
    q = q * cos_full + (q @ rot) * sin_full
    k = k * cos_full + (k @ rot) * sin_full
    outs = []
    for h in range(n_heads):
        sl = slice(h * head_dim, (h + 1) * head_dim)
        s = (q[:, sl] @ k[:, sl].T) / math.sqrt(head_dim) + mask
        p = jax.nn.softmax(s, axis=-1)
        outs.append(p @ v[:, sl])
    return jnp.concatenate(outs, axis=-1) @ wo


# --------------------------------- main --------------------------------------
if __name__ == "__main__":
    key = jax.random.PRNGKey(0)
    kx, kq, kk, kv, ko = jax.random.split(key, 5)

    x = jax.random.normal(kx, (SEQLEN, DIM), dtype=jnp.float32)
    wq = (0.02 * jax.random.normal(kq, (DIM, DIM))).astype(jnp.float32)
    wk = (0.02 * jax.random.normal(kk, (DIM, DIM))).astype(jnp.float32)
    wv = (0.02 * jax.random.normal(kv, (DIM, DIM))).astype(jnp.float32)
    wo = (0.02 * jax.random.normal(ko, (DIM, DIM))).astype(jnp.float32)

    out = attention_forward(x, wq, wk, wv, wo,
                            n_heads=N_HEADS, head_dim=HEAD_DIM,
                            start_pos=START_POS)
    out = jax.block_until_ready(out)

    # pure-JAX reference for validation
    cos_full, sin_full = make_rope_tables(SEQLEN, START_POS, N_HEADS, HEAD_DIM)
    rot = make_rot_matrix(DIM)
    mask = jnp.triu(jnp.full((SEQLEN, START_POS + SEQLEN), float("-inf"),
                             dtype=jnp.float32), k=1 + START_POS)
    ref = reference_forward(x, wq, wk, wv, wo, cos_full, sin_full, rot, mask,
                            N_HEADS, HEAD_DIM)

    assert out.shape == (SEQLEN, DIM)
    # tolerance loosened slightly for the EUP approx reciprocal in softmax
    assert jnp.allclose(out, ref, atol=1e-3, rtol=1e-3), "mismatch vs reference"

    print("KERNEL_OK")
</pallas_src>

<mosaic_0001>
module attributes {stable_mosaic.version = 11 : i64} {
  func.func @_attention_kernel(%arg0: memref<8x32xf32, #tpu.memory_space<vmem>>, %arg1: memref<32x160xf32, #tpu.memory_space<vmem>>, %arg2: memref<32x32xf32, #tpu.memory_space<vmem>>, %arg3: memref<8x32xf32, #tpu.memory_space<vmem>>, %arg4: memref<8x32xf32, #tpu.memory_space<vmem>>, %arg5: memref<8x32xf32, #tpu.memory_space<vmem>>, %arg6: memref<8x32xf32, #tpu.memory_space<vmem>>) attributes {dimension_semantics = [], scalar_prefetch = 0 : i64, scratch_operands = 1 : i64, tpu.core_type = #tpu.core_type<tc>} {
    %c0 = arith.constant 0 : index
    %c0_0 = arith.constant 0 : index
    %0 = vector.load %arg0[%c0, %c0_0] : memref<8x32xf32, #tpu.memory_space<vmem>>, vector<8x32xf32>
    %c0_1 = arith.constant 0 : index
    %c0_2 = arith.constant 0 : index
    %1 = vector.load %arg1[%c0_1, %c0_2] : memref<32x160xf32, #tpu.memory_space<vmem>>, vector<32x160xf32>
    %cst = arith.constant dense<0.000000e+00> : vector<8x160xf32>
    %2 = tpu.matmul %0, %1, %cst {dimension_numbers = #tpu.dot_dimension_numbers<[1], [0], [0], [1], [0, 0, 1, 1], [], []>} : vector<8x32xf32>, vector<32x160xf32>, vector<8x160xf32> -> vector<8x160xf32>
    %c0_3 = arith.constant 0 : index
    %c0_4 = arith.constant 0 : index
    %3 = vector.load %arg3[%c0_3, %c0_4] : memref<8x32xf32, #tpu.memory_space<vmem>>, vector<8x32xf32>
    %c0_5 = arith.constant 0 : index
    %c0_6 = arith.constant 0 : index
    %4 = vector.load %arg4[%c0_5, %c0_6] : memref<8x32xf32, #tpu.memory_space<vmem>>, vector<8x32xf32>
    %5 = vector.extract_strided_slice %2 {offsets = [0, 0], sizes = [8, 32], strides = [1, 1]} : vector<8x160xf32> to vector<8x32xf32>
    %6 = arith.mulf %5, %3 : vector<8x32xf32>
    %7 = vector.extract_strided_slice %2 {offsets = [0, 96], sizes = [8, 32], strides = [1, 1]} : vector<8x160xf32> to vector<8x32xf32>
    %8 = arith.mulf %7, %4 : vector<8x32xf32>
    %9 = arith.addf %6, %8 : vector<8x32xf32>
    %10 = vector.extract_strided_slice %2 {offsets = [0, 32], sizes = [8, 32], strides = [1, 1]} : vector<8x160xf32> to vector<8x32xf32>
    %11 = arith.mulf %10, %3 : vector<8x32xf32>
    %12 = vector.extract_strided_slice %2 {offsets = [0, 128], sizes = [8, 32], strides = [1, 1]} : vector<8x160xf32> to vector<8x32xf32>
    %13 = arith.mulf %12, %4 : vector<8x32xf32>
    %14 = arith.addf %11, %13 : vector<8x32xf32>
    %15 = vector.extract_strided_slice %2 {offsets = [0, 64], sizes = [8, 32], strides = [1, 1]} : vector<8x160xf32> to vector<8x32xf32>
    %16 = tpu.iota {dimensions = array<i32: 0>} : vector<8x8xi32>
    %17 = tpu.iota {dimensions = array<i32: 1>} : vector<8x8xi32>
    %18 = arith.cmpi sle, %17, %16 : vector<8x8xi32>
    %19 = vector.extract_strided_slice %9 {offsets = [0, 0], sizes = [8, 8], strides = [1, 1]} : vector<8x32xf32> to vector<8x8xf32>
    %20 = vector.extract_strided_slice %14 {offsets = [0, 0], sizes = [8, 8], strides = [1, 1]} : vector<8x32xf32> to vector<8x8xf32>
    %21 = vector.extract_strided_slice %15 {offsets = [0, 0], sizes = [8, 8], strides = [1, 1]} : vector<8x32xf32> to vector<8x8xf32>
    %22 = tpu.transpose %20, [1, 0] : vector<8x8xf32> -> vector<8x8xf32>
    %cst_7 = arith.constant dense<0.000000e+00> : vector<8x8xf32>
    %23 = tpu.matmul %19, %22, %cst_7 {dimension_numbers = #tpu.dot_dimension_numbers<[1], [0], [0], [1], [0, 0, 1, 1], [], []>} : vector<8x8xf32>, vector<8x8xf32>, vector<8x8xf32> -> vector<8x8xf32>
    %cst_8 = arith.constant 0xFF800000 : f32
    %24 = vector.broadcast %cst_8 : f32 to vector<8x8xf32>
    %25 = arith.select %18, %23, %24 : vector<8x8xi1>, vector<8x8xf32>
    %cst_9 = arith.constant dense<0xFF800000> : vector<8xf32>
    %26 = vector.multi_reduction <maximumf>, %25, %cst_9 [1] : vector<8x8xf32> to vector<8xf32>
    %27 = vector.shape_cast %26 : vector<8xf32> to vector<8x1xf32>
    %28 = vector.broadcast %27 : vector<8x1xf32> to vector<8x8xf32>
    %29 = arith.subf %25, %28 : vector<8x8xf32>
    %30 = math.exp %29 : vector<8x8xf32>
    %cst_10 = arith.constant dense<0.000000e+00> : vector<8xf32>
    %31 = vector.multi_reduction <add>, %30, %cst_10 [1] : vector<8x8xf32> to vector<8xf32>
    %32 = vector.shape_cast %31 : vector<8xf32> to vector<8x1xf32>
    %33 = tpu.reciprocal %32 {approx = true} : vector<8x1xf32> -> vector<8x1xf32>
    %34 = vector.broadcast %33 : vector<8x1xf32> to vector<8x8xf32>
    %35 = arith.mulf %30, %34 : vector<8x8xf32>
    %cst_11 = arith.constant dense<0.000000e+00> : vector<8x8xf32>
    %36 = tpu.matmul %35, %21, %cst_11 {dimension_numbers = #tpu.dot_dimension_numbers<[1], [0], [0], [1], [0, 0, 1, 1], [], []>} : vector<8x8xf32>, vector<8x8xf32>, vector<8x8xf32> -> vector<8x8xf32>
    %c0_12 = arith.constant 0 : index
    %c0_13 = arith.constant 0 : index
    %37 = vector.load %arg6[%c0_12, %c0_13] : memref<8x32xf32, #tpu.memory_space<vmem>>, vector<8x8xf32>
    tpu.vector_store %arg6[%c0_12, %c0_13], %36 {strides = array<i32>} : memref<8x32xf32, #tpu.memory_space<vmem>>, vector<8x8xf32>,
    %38 = vector.extract_strided_slice %9 {offsets = [0, 8], sizes = [8, 8], strides = [1, 1]} : vector<8x32xf32> to vector<8x8xf32>
    %39 = vector.extract_strided_slice %14 {offsets = [0, 8], sizes = [8, 8], strides = [1, 1]} : vector<8x32xf32> to vector<8x8xf32>
    %40 = vector.extract_strided_slice %15 {offsets = [0, 8], sizes = [8, 8], strides = [1, 1]} : vector<8x32xf32> to vector<8x8xf32>
    %41 = tpu.transpose %39, [1, 0] : vector<8x8xf32> -> vector<8x8xf32>
    %cst_14 = arith.constant dense<0.000000e+00> : vector<8x8xf32>
    %42 = tpu.matmul %38, %41, %cst_14 {dimension_numbers = #tpu.dot_dimension_numbers<[1], [0], [0], [1], [0, 0, 1, 1], [], []>} : vector<8x8xf32>, vector<8x8xf32>, vector<8x8xf32> -> vector<8x8xf32>
    %cst_15 = arith.constant 0xFF800000 : f32
    %43 = vector.broadcast %cst_15 : f32 to vector<8x8xf32>
    %44 = arith.select %18, %42, %43 : vector<8x8xi1>, vector<8x8xf32>
    %cst_16 = arith.constant dense<0xFF800000> : vector<8xf32>
    %45 = vector.multi_reduction <maximumf>, %44, %cst_16 [1] : vector<8x8xf32> to vector<8xf32>
    %46 = vector.shape_cast %45 : vector<8xf32> to vector<8x1xf32>
    %47 = vector.broadcast %46 : vector<8x1xf32> to vector<8x8xf32>
    %48 = arith.subf %44, %47 : vector<8x8xf32>
    %49 = math.exp %48 : vector<8x8xf32>
    %cst_17 = arith.constant dense<0.000000e+00> : vector<8xf32>
    %50 = vector.multi_reduction <add>, %49, %cst_17 [1] : vector<8x8xf32> to vector<8xf32>
    %51 = vector.shape_cast %50 : vector<8xf32> to vector<8x1xf32>
    %52 = tpu.reciprocal %51 {approx = true} : vector<8x1xf32> -> vector<8x1xf32>
    %53 = vector.broadcast %52 : vector<8x1xf32> to vector<8x8xf32>
    %54 = arith.mulf %49, %53 : vector<8x8xf32>
    %cst_18 = arith.constant dense<0.000000e+00> : vector<8x8xf32>
    %55 = tpu.matmul %54, %40, %cst_18 {dimension_numbers = #tpu.dot_dimension_numbers<[1], [0], [0], [1], [0, 0, 1, 1], [], []>} : vector<8x8xf32>, vector<8x8xf32>, vector<8x8xf32> -> vector<8x8xf32>
    %c0_19 = arith.constant 0 : index
    %c8 = arith.constant 8 : index
    %56 = vector.load %arg6[%c0_19, %c8] : memref<8x32xf32, #tpu.memory_space<vmem>>, vector<8x8xf32>
    tpu.vector_store %arg6[%c0_19, %c8], %55 {strides = array<i32>} : memref<8x32xf32, #tpu.memory_space<vmem>>, vector<8x8xf32>,
    %57 = vector.extract_strided_slice %9 {offsets = [0, 16], sizes = [8, 8], strides = [1, 1]} : vector<8x32xf32> to vector<8x8xf32>
    %58 = vector.extract_strided_slice %14 {offsets = [0, 16], sizes = [8, 8], strides = [1, 1]} : vector<8x32xf32> to vector<8x8xf32>
    %59 = vector.extract_strided_slice %15 {offsets = [0, 16], sizes = [8, 8], strides = [1, 1]} : vector<8x32xf32> to vector<8x8xf32>
    %60 = tpu.transpose %58, [1, 0] : vector<8x8xf32> -> vector<8x8xf32>
    %cst_20 = arith.constant dense<0.000000e+00> : vector<8x8xf32>
    %61 = tpu.matmul %57, %60, %cst_20 {dimension_numbers = #tpu.dot_dimension_numbers<[1], [0], [0], [1], [0, 0, 1, 1], [], []>} : vector<8x8xf32>, vector<8x8xf32>, vector<8x8xf32> -> vector<8x8xf32>
    %cst_21 = arith.constant 0xFF800000 : f32
    %62 = vector.broadcast %cst_21 : f32 to vector<8x8xf32>
    %63 = arith.select %18, %61, %62 : vector<8x8xi1>, vector<8x8xf32>
    %cst_22 = arith.constant dense<0xFF800000> : vector<8xf32>
    %64 = vector.multi_reduction <maximumf>, %63, %cst_22 [1] : vector<8x8xf32> to vector<8xf32>
    %65 = vector.shape_cast %64 : vector<8xf32> to vector<8x1xf32>
    %66 = vector.broadcast %65 : vector<8x1xf32> to vector<8x8xf32>
    %67 = arith.subf %63, %66 : vector<8x8xf32>
    %68 = math.exp %67 : vector<8x8xf32>
    %cst_23 = arith.constant dense<0.000000e+00> : vector<8xf32>
    %69 = vector.multi_reduction <add>, %68, %cst_23 [1] : vector<8x8xf32> to vector<8xf32>
    %70 = vector.shape_cast %69 : vector<8xf32> to vector<8x1xf32>
    %71 = tpu.reciprocal %70 {approx = true} : vector<8x1xf32> -> vector<8x1xf32>
    %72 = vector.broadcast %71 : vector<8x1xf32> to vector<8x8xf32>
    %73 = arith.mulf %68, %72 : vector<8x8xf32>
    %cst_24 = arith.constant dense<0.000000e+00> : vector<8x8xf32>
    %74 = tpu.matmul %73, %59, %cst_24 {dimension_numbers = #tpu.dot_dimension_numbers<[1], [0], [0], [1], [0, 0, 1, 1], [], []>} : vector<8x8xf32>, vector<8x8xf32>, vector<8x8xf32> -> vector<8x8xf32>
    %c0_25 = arith.constant 0 : index
    %c16 = arith.constant 16 : index
    %75 = vector.load %arg6[%c0_25, %c16] : memref<8x32xf32, #tpu.memory_space<vmem>>, vector<8x8xf32>
    tpu.vector_store %arg6[%c0_25, %c16], %74 {strides = array<i32>} : memref<8x32xf32, #tpu.memory_space<vmem>>, vector<8x8xf32>,
    %76 = vector.extract_strided_slice %9 {offsets = [0, 24], sizes = [8, 8], strides = [1, 1]} : vector<8x32xf32> to vector<8x8xf32>
    %77 = vector.extract_strided_slice %14 {offsets = [0, 24], sizes = [8, 8], strides = [1, 1]} : vector<8x32xf32> to vector<8x8xf32>
    %78 = vector.extract_strided_slice %15 {offsets = [0, 24], sizes = [8, 8], strides = [1, 1]} : vector<8x32xf32> to vector<8x8xf32>
    %79 = tpu.transpose %77, [1, 0] : vector<8x8xf32> -> vector<8x8xf32>
    %cst_26 = arith.constant dense<0.000000e+00> : vector<8x8xf32>
    %80 = tpu.matmul %76, %79, %cst_26 {dimension_numbers = #tpu.dot_dimension_numbers<[1], [0], [0], [1], [0, 0, 1, 1], [], []>} : vector<8x8xf32>, vector<8x8xf32>, vector<8x8xf32> -> vector<8x8xf32>
    %cst_27 = arith.constant 0xFF800000 : f32
    %81 = vector.broadcast %cst_27 : f32 to vector<8x8xf32>
    %82 = arith.select %18, %80, %81 : vector<8x8xi1>, vector<8x8xf32>
    %cst_28 = arith.constant dense<0xFF800000> : vector<8xf32>
    %83 = vector.multi_reduction <maximumf>, %82, %cst_28 [1] : vector<8x8xf32> to vector<8xf32>
    %84 = vector.shape_cast %83 : vector<8xf32> to vector<8x1xf32>
    %85 = vector.broadcast %84 : vector<8x1xf32> to vector<8x8xf32>
    %86 = arith.subf %82, %85 : vector<8x8xf32>
    %87 = math.exp %86 : vector<8x8xf32>
    %cst_29 = arith.constant dense<0.000000e+00> : vector<8xf32>
    %88 = vector.multi_reduction <add>, %87, %cst_29 [1] : vector<8x8xf32> to vector<8xf32>
    %89 = vector.shape_cast %88 : vector<8xf32> to vector<8x1xf32>
    %90 = tpu.reciprocal %89 {approx = true} : vector<8x1xf32> -> vector<8x1xf32>
    %91 = vector.broadcast %90 : vector<8x1xf32> to vector<8x8xf32>
    %92 = arith.mulf %87, %91 : vector<8x8xf32>
    %cst_30 = arith.constant dense<0.000000e+00> : vector<8x8xf32>
    %93 = tpu.matmul %92, %78, %cst_30 {dimension_numbers = #tpu.dot_dimension_numbers<[1], [0], [0], [1], [0, 0, 1, 1], [], []>} : vector<8x8xf32>, vector<8x8xf32>, vector<8x8xf32> -> vector<8x8xf32>
    %c0_31 = arith.constant 0 : index
    %c24 = arith.constant 24 : index
    %94 = vector.load %arg6[%c0_31, %c24] : memref<8x32xf32, #tpu.memory_space<vmem>>, vector<8x8xf32>
    tpu.vector_store %arg6[%c0_31, %c24], %93 {strides = array<i32>} : memref<8x32xf32, #tpu.memory_space<vmem>>, vector<8x8xf32>,
    %c0_32 = arith.constant 0 : index
    %c0_33 = arith.constant 0 : index
    %95 = vector.load %arg6[%c0_32, %c0_33] : memref<8x32xf32, #tpu.memory_space<vmem>>, vector<8x32xf32>
    %c0_34 = arith.constant 0 : index
    %c0_35 = arith.constant 0 : index
    %96 = vector.load %arg2[%c0_34, %c0_35] : memref<32x32xf32, #tpu.memory_space<vmem>>, vector<32x32xf32>
    %cst_36 = arith.constant dense<0.000000e+00> : vector<8x32xf32>
    %97 = tpu.matmul %95, %96, %cst_36 {dimension_numbers = #tpu.dot_dimension_numbers<[1], [0], [0], [1], [0, 0, 1, 1], [], []>} : vector<8x32xf32>, vector<32x32xf32>, vector<8x32xf32> -> vector<8x32xf32>
    %c0_37 = arith.constant 0 : index
    %c0_38 = arith.constant 0 : index
    %98 = vector.load %arg5[%c0_37, %c0_38] : memref<8x32xf32, #tpu.memory_space<vmem>>, vector<8x32xf32>
    tpu.vector_store %arg5[%c0_37, %c0_38], %97 {strides = array<i32>} : memref<8x32xf32, #tpu.memory_space<vmem>>, vector<8x32xf32>,
    return
  }
}

</mosaic_0001>

<llo_original>
// kernel: tpu_custom_call.1
$region0: #{tpu_custom_call.1}
  #allocation0 [shape = 'u32[]', space=smem, size = 0x4, offset = 0x4, fixed_abs, tag = 'smem constant byte address 0x4 - core index']
  #allocation1 [shape = 'u32[144,128]{1,0:T(1,128)}', space=vmem, size = 0x12000, scoped, tag = 'internal scratch']
  #allocation2 [shape = 'f32[8,32]{1,0:T(8,128)}', space=vmem, size = 0x1000, scoped, tag = 'scratch operand']
  %s0 = inlined_call_operand.hbm [shape: f32[8,32], index: 0, kind: input, shape index: {}]
  %s1 = inlined_call_operand.hbm [shape: f32[32,160], index: 1, kind: input, shape index: {}]
  %s2 = inlined_call_operand.hbm [shape: f32[32,32], index: 2, kind: input, shape index: {}]
  %s3 = inlined_call_operand.vmem [shape: f32[8,32], index: 3, kind: input, shape index: {}]
  %s4 = inlined_call_operand.hbm [shape: f32[8,32], index: 4, kind: input, shape index: {}]
  %s5 = inlined_call_operand.hbm [shape: f32[8,32], index: 5, kind: output, shape index: {}]
  %s6 = sld [smem:[#allocation0]]
  $region46: #{tpu_custom_call.1} parent=0
    _
  %s8 = ssub.s32 1, %s6
  %s9 = scalar_select 0, %s8, %s6
  $region1: #{tpu_custom_call.1} parent=0
    #allocation3 [shape = 'u8[4096]{0}', space=vmem, size = 0x1000, scoped, tag = 'input window, operand 0, single buffered']
    #allocation4 [shape = 's32[1]{0}', space=sflag, size = 0x4, scoped, tag = 'scoped memory for tpu_custom_call.1']
    #allocation5 [shape = 's32[1]{0}', space=sflag, size = 0x4, scoped, tag = 'scoped memory for tpu_custom_call.1']
    #allocation6 [shape = 'u8[32768]{0}', space=vmem, size = 0x8000, scoped, tag = 'input window, operand 1, single buffered']
    #allocation7 [shape = 's32[1]{0}', space=sflag, size = 0x4, scoped, tag = 'scoped memory for tpu_custom_call.1']
    #allocation8 [shape = 'u8[16384]{0}', space=vmem, size = 0x4000, scoped, tag = 'input window, operand 2, single buffered']
    #allocation9 [shape = 'u8[4096]{0}', space=vmem, size = 0x1000, scoped, tag = 'input window, operand 4, single buffered']
    #allocation10 [shape = 's32[1]{0}', space=sflag, size = 0x4, scoped, tag = 'scoped memory for tpu_custom_call.1']
    #allocation11 [shape = 'u8[4096]{0}', space=vmem, size = 0x1000, scoped, tag = 'output window, operand 0, single buffered']
    %10 = vsyncpa [#allocation4], 0
    %11 = vsyncpa [#allocation7], 0
    %12 = vsyncpa [#allocation10], 0
    %13 = vsyncpa [#allocation5], 0
    // Predicated region
    $region2: #{tpu_custom_call.1} parent=1 // pred_check
      _
    $region3: #{tpu_custom_call.1} parent=1 // pred_check_branch
      %15 = sbr.rel (0) target = $region5
    $region4: #{tpu_custom_call.1} parent=1 // pred_region
      %s17 = ssub.s32 128, 128
      %18 = vsyncadd [#allocation4], %s17
      %s20 = sshll.u32 [#allocation3], 4
      %s21 = int_to_ptr.vmem [resolvable:$true] %s20
      %23 = dma.hbm_to_vmem [thread:$0]  %s0, 128, %s21, [#allocation4]
    $region5: #{tpu_custom_call.1} parent=1 // pred_fallthru
      _
    // Predicated region
    $region6: #{tpu_custom_call.1} parent=1 // pred_check
      _
    $region7: #{tpu_custom_call.1} parent=1 // pred_check_branch
      %25 = sbr.rel (0) target = $region9
    $region8: #{tpu_custom_call.1} parent=1 // pred_region
      %s27 = ssub.s32 1024, 1024
      %28 = vsyncadd [#allocation7], %s27
      %s29 = sshll.u32 [#allocation6], 4
      %s30 = int_to_ptr.vmem [resolvable:$true] %s29
      %35 = dma.hbm_to_vmem [thread:$0]  %s1, 1024, %s30, [#allocation7], 256, 256, 16
    $region9: #{tpu_custom_call.1} parent=1 // pred_fallthru
      _
    // Predicated region
    $region10: #{tpu_custom_call.1} parent=1 // pred_check
      _
    $region11: #{tpu_custom_call.1} parent=1 // pred_check_branch
      %37 = sbr.rel (0) target = $region13
    $region12: #{tpu_custom_call.1} parent=1 // pred_region
      %s39 = ssub.s32 512, 512
      %40 = vsyncadd [#allocation7], %s39
      %s41 = sshll.u32 [#allocation8], 4
      %s42 = int_to_ptr.vmem [resolvable:$true] %s41
      %47 = dma.hbm_to_vmem [thread:$0]  %s2, 512, %s42, [#allocation7], 128, 128, 8
    $region13: #{tpu_custom_call.1} parent=1 // pred_fallthru
      _
    // Predicated region
    $region14: #{tpu_custom_call.1} parent=1 // pred_check
      _
    $region15: #{tpu_custom_call.1} parent=1 // pred_check_branch
      %49 = sbr.rel (0) target = $region17
    $region16: #{tpu_custom_call.1} parent=1 // pred_region
      _
    $region17: #{tpu_custom_call.1} parent=1 // pred_fallthru
      _
    // Predicated region
    $region18: #{tpu_custom_call.1} parent=1 // pred_check
      _
    $region19: #{tpu_custom_call.1} parent=1 // pred_check_branch
      %51 = sbr.rel (0) target = $region21
    $region20: #{tpu_custom_call.1} parent=1 // pred_region
      %s53 = ssub.s32 128, 128
      %54 = vsyncadd [#allocation10], %s53
      %s56 = sshll.u32 [#allocation9], 4
      %s57 = int_to_ptr.vmem [resolvable:$true] %s56
      %59 = dma.hbm_to_vmem [thread:$0]  %s4, 128, %s57, [#allocation10]
    $region21: #{tpu_custom_call.1} parent=1 // pred_fallthru
      _
    // Predicated region
    $region22: #{tpu_custom_call.1} parent=1 // pred_check
      _
    $region23: #{tpu_custom_call.1} parent=1 // pred_check_branch
      %61 = sbr.rel (0) target = $region25
    $region24: #{tpu_custom_call.1} parent=1 // pred_region
      %62 = dma.done [#allocation4], 128
    $region25: #{tpu_custom_call.1} parent=1 // pred_fallthru
      _
    // Predicated region
    $region26: #{tpu_custom_call.1} parent=1 // pred_check
      _
    $region27: #{tpu_custom_call.1} parent=1 // pred_check_branch
      %64 = sbr.rel (0) target = $region29
    $region28: #{tpu_custom_call.1} parent=1 // pred_region
      %65 = dma.done [#allocation7], 1024
    $region29: #{tpu_custom_call.1} parent=1 // pred_fallthru
      _
    // Predicated region
    $region30: #{tpu_custom_call.1} parent=1 // pred_check
      _
    $region31: #{tpu_custom_call.1} parent=1 // pred_check_branch
      %67 = sbr.rel (0) target = $region33
    $region32: #{tpu_custom_call.1} parent=1 // pred_region
      %68 = dma.done [#allocation7], 512
    $region33: #{tpu_custom_call.1} parent=1 // pred_fallthru
      _
    // Predicated region
    $region34: #{tpu_custom_call.1} parent=1 // pred_check
      _
    $region35: #{tpu_custom_call.1} parent=1 // pred_check_branch
      %70 = sbr.rel (0) target = $region37
    $region36: #{tpu_custom_call.1} parent=1 // pred_region
      %71 = dma.done [#allocation10], 128
    $region37: #{tpu_custom_call.1} parent=1 // pred_fallthru
      _
    %v72 = vld [vmem:[#allocation3] sm:$0xff]
    %v73 = vld [vmem:[#allocation6] sm:$0xff]
    %v74 = vld [vmem:[#allocation6 + $0x8] sm:$0xff]
    %v75 = vld [vmem:[#allocation6 + $0x10] sm:$0xff]
    %v76 = vld [vmem:[#allocation6 + $0x18] sm:$0xff]
    %v77 = vld [vmem:[#allocation6 + $0x20] sm:$0xff]
    %v78 = vld [vmem:[#allocation6 + $0x28] sm:$0xff]
    %v79 = vld [vmem:[#allocation6 + $0x30] sm:$0xff]
    %v80 = vld [vmem:[#allocation6 + $0x38] sm:$0xff]
    %vm81 = vcmask 261120
    %v83 = vsel %vm81, %v72, 0
    %85 = vmatprep.subr.mxu0 %v74
    %86 = vmatpush1.msra.mxu0 %v73
    %87 = vmatprep.subr.mxu0 %v76
    %88 = vmatpush1.msra.mxu0 %v75
    %89 = vmatprep.subr.mxu0 %v78
    %90 = vmatpush1.msra.mxu0 %v77
    %91 = vmatprep.subr.mxu0 %v80
    %92 = vmatpush1.msra.mxu0 %v79
    %93 = vmatprep.subr.mxu0 0.0
    %94 = vmatpush1.msra.mxu0 0.0
    %95 = vmatprep.subr.mxu0 0.0
    %96 = vmatpush1.msra.mxu0 0.0
    %97 = vmatprep.subr.mxu0 0.0
    %98 = vmatpush1.msra.mxu0 0.0
    %99 = vmatprep.subr.mxu0 0.0
    %100 = vmatpush1.msra.mxu0 0.0
    %101 = vmatprep.subr.mxu0 0.0
    %102 = vmatpush1.msra.mxu0 0.0
    %103 = vmatprep.subr.mxu0 0.0
    %104 = vmatpush1.msra.mxu0 0.0
    %105 = vmatprep.subr.mxu0 0.0
    %106 = vmatpush1.msra.mxu0 0.0
    %107 = vmatprep.subr.mxu0 0.0
    %108 = vmatpush1.msra.mxu0 0.0
    %109 = vmatprep.subr.mxu0 0.0
    %110 = vmatpush1.msra.mxu0 0.0
    %111 = vmatprep.subr.mxu0 0.0
    %112 = vmatpush1.msra.mxu0 0.0
    %113 = vmatprep.subr.mxu0 0.0
    %114 = vmatpush1.msra.mxu0 0.0
    %115 = vmatprep.subr.mxu0 0.0
    %116 = vmatpush1.msra.mxu0 0.0
    %117 = vmatprep.subr.mxu0 0.0
    %118 = vmatpush1.msra.mxu0 0.0
    %119 = vmatprep.subr.mxu0 0.0
    %120 = vmatpush1.msra.mxu0 0.0
    %121 = vmatprep.subr.mxu0 0.0
    %122 = vmatpush1.msra.mxu0 0.0
    %123 = vmatprep.subr.mxu0 0.0
    %124 = vmatpush1.msra.mxu0 0.0
    %125 = vmatprep.subr.mxu0 0.0
    %126 = vmatpush1.msra.mxu0 0.0
    %127 = vmatprep.subr.mxu0 0.0
    %128 = vmatpush1.msra.mxu0 0.0
    %129 = vmatprep.subr.mxu0 0.0
    %130 = vmatpush1.msra.mxu0 0.0
    %131 = vmatprep.subr.mxu0 0.0
    %132 = vmatpush1.msra.mxu0 0.0
    %133 = vmatprep.subr.mxu0 0.0
    %134 = vmatpush1.msra.mxu0 0.0
    %135 = vmatprep.subr.mxu0 0.0
    %136 = vmatpush1.msra.mxu0 0.0
    %137 = vmatprep.subr.mxu0 0.0
    %138 = vmatpush1.msra.mxu0 0.0
    %139 = vmatprep.subr.mxu0 0.0
    %140 = vmatpush1.msra.mxu0 0.0
    %141 = vmatprep.subr.mxu0 0.0
    %142 = vmatpush1.msra.mxu0 0.0
    %143 = vmatprep.subr.mxu0 0.0
    %144 = vmatpush1.msra.mxu0 0.0
    %145 = vmatprep.subr.mxu0 0.0
    %146 = vmatpush1.msra.mxu0 0.0
    %147 = vmatprep.subr.mxu0 0.0
    %148 = vmatpush1.msra.mxu0 0.0
    %149 = vmatprep.mubr.f32.mxu0 0.0
    %150 = vmatmul.mubr.f32.gmra.mrb[0].mxu0 %v83
    %v151 = vpop.f32.mrb[0].mxu0
    %v152 = vadd.f32 0.0, %v151
    %v153 = vpop.f32.mrb[0].mxu0
    %v154 = vadd.f32 0.0, %v153
    %155 = vdwg.mxu0
    %v156 = vld [vmem:[%s3] sm:$0xff]
    %v157 = vld [vmem:[#allocation9] sm:$0xff]
    %v158 = vmul.f32 %v152, %v156
    %160 = vrot.lane.b32.xlu0 %v157, 96
    %v161 = vpop.permute.xlu0 %160
    %v163 = vmul.f32 %v152, %v161
    %165 = vrot.lane.b32.xlu0 %v163, 32
    %v166 = vpop.permute.xlu0 %165
    %v168 = vadd.f32 %v158, %v166
    %170 = vrot.lane.b32.xlu0 %v156, 32
    %v171 = vpop.permute.xlu0 %170
    %v173 = vmul.f32 %v152, %v171
    %v174 = vmul.f32 %v154, %v157
    %176 = vrot.lane.b32.xlu0 %v174, 32
    %v177 = vpop.permute.xlu0 %176
    %v179 = vadd.f32 %v173, %v177
    %v180 = vlaneseq
    %v181 = vshrl.u32 %v180, 7
    %v182 = vlaneseq
    %v183 = vand.u32 %v182, 127
    %vm184 = vcmp.le.s32.totalorder %v183, %v181
    %186 = vrot.lane.b32.xlu0 %v179, 96
    %v187 = vpop.permute.xlu0 %186
    %vm188 = vcmask 64512
    %v190 = vsel %vm188, %v168, 0
    %v192 = vsel %vm188, %v187, 0
    %194 = vmatprep.subr.mxu0 0.0
    %195 = vmatpush1.xpose.msra.mxu0 %v192
    %196 = vmatprep.subr.mxu0 0.0
    %197 = vmatpush1.xpose.msra.mxu0 0.0
    %198 = vmatprep.subr.mxu0 0.0
    %199 = vmatpush1.xpose.msra.mxu0 0.0
    %200 = vmatprep.subr.mxu0 0.0
    %201 = vmatpush1.xpose.msra.mxu0 0.0
    %202 = vmatprep.subr.mxu0 0.0
    %203 = vmatpush1.xpose.msra.mxu0 0.0
    %204 = vmatprep.subr.mxu0 0.0
    %205 = vmatpush1.xpose.msra.mxu0 0.0
    %206 = vmatprep.subr.mxu0 0.0
    %207 = vmatpush1.xpose.msra.mxu0 0.0
    %208 = vmatprep.subr.mxu0 0.0
    %209 = vmatpush1.xpose.msra.mxu0 0.0
    %210 = vmatprep.subr.mxu0 0.0
    %211 = vmatpush1.xpose.msra.mxu0 0.0
    %212 = vmatprep.subr.mxu0 0.0
    %213 = vmatpush1.xpose.msra.mxu0 0.0
    %214 = vmatprep.subr.mxu0 0.0
    %215 = vmatpush1.xpose.msra.mxu0 0.0
    %216 = vmatprep.subr.mxu0 0.0
    %217 = vmatpush1.xpose.msra.mxu0 0.0
    %218 = vmatprep.subr.mxu0 0.0
    %219 = vmatpush1.xpose.msra.mxu0 0.0
    %220 = vmatprep.subr.mxu0 0.0
    %221 = vmatpush1.xpose.msra.mxu0 0.0
    %222 = vmatprep.subr.mxu0 0.0
    %223 = vmatpush1.xpose.msra.mxu0 0.0
    %224 = vmatprep.subr.mxu0 0.0
    %225 = vmatpush1.xpose.msra.mxu0 0.0
    %226 = vmatprep.subr.mxu0 0.0
    %227 = vmatpush1.xpose.msra.mxu0 0.0
    %228 = vmatprep.subr.mxu0 0.0
    %229 = vmatpush1.xpose.msra.mxu0 0.0
    %230 = vmatprep.subr.mxu0 0.0
    %231 = vmatpush1.xpose.msra.mxu0 0.0
    %232 = vmatprep.subr.mxu0 0.0
    %233 = vmatpush1.xpose.msra.mxu0 0.0
    %234 = vmatprep.subr.mxu0 0.0
    %235 = vmatpush1.xpose.msra.mxu0 0.0
    %236 = vmatprep.subr.mxu0 0.0
    %237 = vmatpush1.xpose.msra.mxu0 0.0
    %238 = vmatprep.subr.mxu0 0.0
    %239 = vmatpush1.xpose.msra.mxu0 0.0
    %240 = vmatprep.subr.mxu0 0.0
    %241 = vmatpush1.xpose.msra.mxu0 0.0
    %242 = vmatprep.subr.mxu0 0.0
    %243 = vmatpush1.xpose.msra.mxu0 0.0
    %244 = vmatprep.subr.mxu0 0.0
    %245 = vmatpush1.xpose.msra.mxu0 0.0
    %246 = vmatprep.subr.mxu0 0.0
    %247 = vmatpush1.xpose.msra.mxu0 0.0
    %248 = vmatprep.subr.mxu0 0.0
    %249 = vmatpush1.xpose.msra.mxu0 0.0
    %250 = vmatprep.subr.mxu0 0.0
    %251 = vmatpush1.xpose.msra.mxu0 0.0
    %252 = vmatprep.subr.mxu0 0.0
    %253 = vmatpush1.xpose.msra.mxu0 0.0
    %254 = vmatprep.subr.mxu0 0.0
    %255 = vmatpush1.xpose.msra.mxu0 0.0
    %256 = vmatprep.subr.mxu0 0.0
    %257 = vmatpush1.xpose.msra.mxu0 0.0
    %258 = vmatprep.mubr.f32.mxu0 0.0
    %259 = vmatmul.mubr.f32.gmra.mrb[0].mxu0 %v190
    %v260 = vpop.f32.mrb[0].mxu0
    %v261 = vadd.f32 0.0, %v260
    %v262 = vpop.f32.mrb[0].mxu0
    %263 = vdwg.mxu0
    %v264 = vsel %vm184, %v261, -inf
    %v265 = vsel %vm188, %v264, -inf
    %266 = vmax.xlane.f32.xlu0 %v265
    %v267 = vpop.xlane.xlu0 %266
    %v268 = vsub.f32 %v264, %v267
    %v269 = vmul.f32 %v268, 1.442695
    %v270 = vpow.pop %v269
    %v271 = vsel %vm188, %v270, 0.0
    %272 = vadd.xlane.f32.xlu0 %v271
    %v273 = vpop.xlane.xlu0 %272
    %v274 = vrcp.pop %v273
    %v275 = vmul.f32 %v270, %v274
    %277 = vrot.lane.b32.xlu0 %v152, 64
    %v278 = vpop.permute.xlu0 %277
    %v281 = vsel %vm188, %v275, 0
    %283 = vmatprep.subr.mxu0 0.0
    %284 = vmatpush1.msra.mxu0 %v278
    %285 = vmatprep.subr.mxu0 0.0
    %286 = vmatpush1.msra.mxu0 0.0
    %287 = vmatprep.subr.mxu0 0.0
    %288 = vmatpush1.msra.mxu0 0.0
    %289 = vmatprep.subr.mxu0 0.0
    %290 = vmatpush1.msra.mxu0 0.0
    %291 = vmatprep.subr.mxu0 0.0
    %292 = vmatpush1.msra.mxu0 0.0
    %293 = vmatprep.subr.mxu0 0.0
    %294 = vmatpush1.msra.mxu0 0.0
    %295 = vmatprep.subr.mxu0 0.0
    %296 = vmatpush1.msra.mxu0 0.0
    %297 = vmatprep.subr.mxu0 0.0
    %298 = vmatpush1.msra.mxu0 0.0
    %299 = vmatprep.subr.mxu0 0.0
    %300 = vmatpush1.msra.mxu0 0.0
    %301 = vmatprep.subr.mxu0 0.0
    %302 = vmatpush1.msra.mxu0 0.0
    %303 = vmatprep.subr.mxu0 0.0
    %304 = vmatpush1.msra.mxu0 0.0
    %305 = vmatprep.subr.mxu0 0.0
    %306 = vmatpush1.msra.mxu0 0.0
    %307 = vmatprep.subr.mxu0 0.0
    %308 = vmatpush1.msra.mxu0 0.0
    %309 = vmatprep.subr.mxu0 0.0
    %310 = vmatpush1.msra.mxu0 0.0
    %311 = vmatprep.subr.mxu0 0.0
    %312 = vmatpush1.msra.mxu0 0.0
    %313 = vmatprep.subr.mxu0 0.0
    %314 = vmatpush1.msra.mxu0 0.0
    %315 = vmatprep.subr.mxu0 0.0
    %316 = vmatpush1.msra.mxu0 0.0
    %317 = vmatprep.subr.mxu0 0.0
    %318 = vmatpush1.msra.mxu0 0.0
    %319 = vmatprep.subr.mxu0 0.0
    %320 = vmatpush1.msra.mxu0 0.0
    %321 = vmatprep.subr.mxu0 0.0
    %322 = vmatpush1.msra.mxu0 0.0
    %323 = vmatprep.subr.mxu0 0.0
    %324 = vmatpush1.msra.mxu0 0.0
    %325 = vmatprep.subr.mxu0 0.0
    %326 = vmatpush1.msra.mxu0 0.0
    %327 = vmatprep.subr.mxu0 0.0
    %328 = vmatpush1.msra.mxu0 0.0
    %329 = vmatprep.subr.mxu0 0.0
    %330 = vmatpush1.msra.mxu0 0.0
    %331 = vmatprep.subr.mxu0 0.0
    %332 = vmatpush1.msra.mxu0 0.0
    %333 = vmatprep.subr.mxu0 0.0
    %334 = vmatpush1.msra.mxu0 0.0
    %335 = vmatprep.subr.mxu0 0.0
    %336 = vmatpush1.msra.mxu0 0.0
    %337 = vmatprep.subr.mxu0 0.0
    %338 = vmatpush1.msra.mxu0 0.0
    %339 = vmatprep.subr.mxu0 0.0
    %340 = vmatpush1.msra.mxu0 0.0
    %341 = vmatprep.subr.mxu0 0.0
    %342 = vmatpush1.msra.mxu0 0.0
    %343 = vmatprep.subr.mxu0 0.0
    %344 = vmatpush1.msra.mxu0 0.0
    %345 = vmatprep.subr.mxu0 0.0
    %346 = vmatpush1.msra.mxu0 0.0
    %347 = vmatprep.mubr.f32.mxu0 0.0
    %348 = vmatmul.mubr.f32.gmra.mrb[0].mxu0 %v281
    %v349 = vpop.f32.mrb[0].mxu0
    %v350 = vadd.f32 0.0, %v349
    %v351 = vpop.f32.mrb[0].mxu0
    %352 = vdwg.mxu0
    %353 = vst.msk [vmem:[#allocation2] sm:$0xff] %vm188, %v350
    %354 = vrot.lane.b32.xlu0 %v168, 120
    %v355 = vpop.permute.xlu0 %354
    %356 = vrot.lane.b32.xlu0 %v179, 88
    %v357 = vpop.permute.xlu0 %356
    %v358 = vsel %vm188, %v355, 0
    %v360 = vsel %vm188, %v357, 0
    %362 = vmatprep.subr.mxu0 0.0
    %363 = vmatpush1.xpose.msra.mxu0 %v360
    %364 = vmatprep.subr.mxu0 0.0
    %365 = vmatpush1.xpose.msra.mxu0 0.0
    %366 = vmatprep.subr.mxu0 0.0
    %367 = vmatpush1.xpose.msra.mxu0 0.0
    %368 = vmatprep.subr.mxu0 0.0
    %369 = vmatpush1.xpose.msra.mxu0 0.0
    %370 = vmatprep.subr.mxu0 0.0
    %371 = vmatpush1.xpose.msra.mxu0 0.0
    %372 = vmatprep.subr.mxu0 0.0
    %373 = vmatpush1.xpose.msra.mxu0 0.0
    %374 = vmatprep.subr.mxu0 0.0
    %375 = vmatpush1.xpose.msra.mxu0 0.0
    %376 = vmatprep.subr.mxu0 0.0
    %377 = vmatpush1.xpose.msra.mxu0 0.0
    %378 = vmatprep.subr.mxu0 0.0
    %379 = vmatpush1.xpose.msra.mxu0 0.0
    %380 = vmatprep.subr.mxu0 0.0
    %381 = vmatpush1.xpose.msra.mxu0 0.0
    %382 = vmatprep.subr.mxu0 0.0
    %383 = vmatpush1.xpose.msra.mxu0 0.0
    %384 = vmatprep.subr.mxu0 0.0
    %385 = vmatpush1.xpose.msra.mxu0 0.0
    %386 = vmatprep.subr.mxu0 0.0
    %387 = vmatpush1.xpose.msra.mxu0 0.0
    %388 = vmatprep.subr.mxu0 0.0
    %389 = vmatpush1.xpose.msra.mxu0 0.0
    %390 = vmatprep.subr.mxu0 0.0
    %391 = vmatpush1.xpose.msra.mxu0 0.0
    %392 = vmatprep.subr.mxu0 0.0
    %393 = vmatpush1.xpose.msra.mxu0 0.0
    %394 = vmatprep.subr.mxu0 0.0
    %395 = vmatpush1.xpose.msra.mxu0 0.0
    %396 = vmatprep.subr.mxu0 0.0
    %397 = vmatpush1.xpose.msra.mxu0 0.0
    %398 = vmatprep.subr.mxu0 0.0
    %399 = vmatpush1.xpose.msra.mxu0 0.0
    %400 = vmatprep.subr.mxu0 0.0
    %401 = vmatpush1.xpose.msra.mxu0 0.0
    %402 = vmatprep.subr.mxu0 0.0
    %403 = vmatpush1.xpose.msra.mxu0 0.0
    %404 = vmatprep.subr.mxu0 0.0
    %405 = vmatpush1.xpose.msra.mxu0 0.0
    %406 = vmatprep.subr.mxu0 0.0
    %407 = vmatpush1.xpose.msra.mxu0 0.0
    %408 = vmatprep.subr.mxu0 0.0
    %409 = vmatpush1.xpose.msra.mxu0 0.0
    %410 = vmatprep.subr.mxu0 0.0
    %411 = vmatpush1.xpose.msra.mxu0 0.0
    %412 = vmatprep.subr.mxu0 0.0
    %413 = vmatpush1.xpose.msra.mxu0 0.0
    %414 = vmatprep.subr.mxu0 0.0
    %415 = vmatpush1.xpose.msra.mxu0 0.0
    %416 = vmatprep.subr.mxu0 0.0
    %417 = vmatpush1.xpose.msra.mxu0 0.0
    %418 = vmatprep.subr.mxu0 0.0
    %419 = vmatpush1.xpose.msra.mxu0 0.0
    %420 = vmatprep.subr.mxu0 0.0
    %421 = vmatpush1.xpose.msra.mxu0 0.0
    %422 = vmatprep.subr.mxu0 0.0
    %423 = vmatpush1.xpose.msra.mxu0 0.0
    %424 = vmatprep.subr.mxu0 0.0
    %425 = vmatpush1.xpose.msra.mxu0 0.0
    %426 = vmatprep.mubr.f32.mxu0 0.0
    %427 = vmatmul.mubr.f32.gmra.mrb[0].mxu0 %v358
    %v428 = vpop.f32.mrb[0].mxu0
    %v429 = vadd.f32 0.0, %v428
    %v430 = vpop.f32.mrb[0].mxu0
    %431 = vdwg.mxu0
    %v432 = vsel %vm184, %v429, -inf
    %v433 = vsel %vm188, %v432, -inf
    %434 = vmax.xlane.f32.xlu0 %v433
    %v435 = vpop.xlane.xlu0 %434
    %v436 = vsub.f32 %v432, %v435
    %v437 = vmul.f32 %v436, 1.442695
    %v438 = vpow.pop %v437
    %v439 = vsel %vm188, %v438, 0.0
    %440 = vadd.xlane.f32.xlu0 %v439
    %v441 = vpop.xlane.xlu0 %440
    %v442 = vrcp.pop %v441
    %v443 = vmul.f32 %v438, %v442
    %444 = vrot.lane.b32.xlu0 %v152, 56
    %v445 = vpop.permute.xlu0 %444
    %v448 = vsel %vm188, %v443, 0
    %450 = vmatprep.subr.mxu0 0.0
    %451 = vmatpush1.msra.mxu0 %v445
    %452 = vmatprep.subr.mxu0 0.0
    %453 = vmatpush1.msra.mxu0 0.0
    %454 = vmatprep.subr.mxu0 0.0
    %455 = vmatpush1.msra.mxu0 0.0
    %456 = vmatprep.subr.mxu0 0.0
    %457 = vmatpush1.msra.mxu0 0.0
    %458 = vmatprep.subr.mxu0 0.0
    %459 = vmatpush1.msra.mxu0 0.0
    %460 = vmatprep.subr.mxu0 0.0
    %461 = vmatpush1.msra.mxu0 0.0
    %462 = vmatprep.subr.mxu0 0.0
    %463 = vmatpush1.msra.mxu0 0.0
    %464 = vmatprep.subr.mxu0 0.0
    %465 = vmatpush1.msra.mxu0 0.0
    %466 = vmatprep.subr.mxu0 0.0
    %467 = vmatpush1.msra.mxu0 0.0
    %468 = vmatprep.subr.mxu0 0.0
    %469 = vmatpush1.msra.mxu0 0.0
    %470 = vmatprep.subr.mxu0 0.0
    %471 = vmatpush1.msra.mxu0 0.0
    %472 = vmatprep.subr.mxu0 0.0
    %473 = vmatpush1.msra.mxu0 0.0
    %474 = vmatprep.subr.mxu0 0.0
    %475 = vmatpush1.msra.mxu0 0.0
    %476 = vmatprep.subr.mxu0 0.0
    %477 = vmatpush1.msra.mxu0 0.0
    %478 = vmatprep.subr.mxu0 0.0
    %479 = vmatpush1.msra.mxu0 0.0
    %480 = vmatprep.subr.mxu0 0.0
    %481 = vmatpush1.msra.mxu0 0.0
    %482 = vmatprep.subr.mxu0 0.0
    %483 = vmatpush1.msra.mxu0 0.0
    %484 = vmatprep.subr.mxu0 0.0
    %485 = vmatpush1.msra.mxu0 0.0
    %486 = vmatprep.subr.mxu0 0.0
    %487 = vmatpush1.msra.mxu0 0.0
    %488 = vmatprep.subr.mxu0 0.0
    %489 = vmatpush1.msra.mxu0 0.0
    %490 = vmatprep.subr.mxu0 0.0
    %491 = vmatpush1.msra.mxu0 0.0
    %492 = vmatprep.subr.mxu0 0.0
    %493 = vmatpush1.msra.mxu0 0.0
    %494 = vmatprep.subr.mxu0 0.0
    %495 = vmatpush1.msra.mxu0 0.0
    %496 = vmatprep.subr.mxu0 0.0
    %497 = vmatpush1.msra.mxu0 0.0
    %498 = vmatprep.subr.mxu0 0.0
    %499 = vmatpush1.msra.mxu0 0.0
    %500 = vmatprep.subr.mxu0 0.0
    %501 = vmatpush1.msra.mxu0 0.0
    %502 = vmatprep.subr.mxu0 0.0
    %503 = vmatpush1.msra.mxu0 0.0
    %504 = vmatprep.subr.mxu0 0.0
    %505 = vmatpush1.msra.mxu0 0.0
    %506 = vmatprep.subr.mxu0 0.0
    %507 = vmatpush1.msra.mxu0 0.0
    %508 = vmatprep.subr.mxu0 0.0
    %509 = vmatpush1.msra.mxu0 0.0
    %510 = vmatprep.subr.mxu0 0.0
    %511 = vmatpush1.msra.mxu0 0.0
    %512 = vmatprep.subr.mxu0 0.0
    %513 = vmatpush1.msra.mxu0 0.0
    %514 = vmatprep.mubr.f32.mxu0 0.0
    %515 = vmatmul.mubr.f32.gmra.mrb[0].mxu0 %v448
    %v516 = vpop.f32.mrb[0].mxu0
    %v517 = vadd.f32 0.0, %v516
    %v518 = vpop.f32.mrb[0].mxu0
    %519 = vdwg.mxu0
    %521 = vrot.lane.b32.xlu0 %v517, 8
    %v522 = vpop.permute.xlu0 %521
    %vm524 = vcmask 130112
    %525 = vst.msk [vmem:[#allocation2] sm:$0xff] %vm524, %v522
    %526 = vrot.lane.b32.xlu0 %v168, 112
    %v527 = vpop.permute.xlu0 %526
    %528 = vrot.lane.b32.xlu0 %v179, 80
    %v529 = vpop.permute.xlu0 %528
    %v530 = vsel %vm188, %v527, 0
    %v532 = vsel %vm188, %v529, 0
    %534 = vmatprep.subr.mxu0 0.0
    %535 = vmatpush1.xpose.msra.mxu0 %v532
    %536 = vmatprep.subr.mxu0 0.0
    %537 = vmatpush1.xpose.msra.mxu0 0.0
    %538 = vmatprep.subr.mxu0 0.0
    %539 = vmatpush1.xpose.msra.mxu0 0.0
    %540 = vmatprep.subr.mxu0 0.0
    %541 = vmatpush1.xpose.msra.mxu0 0.0
    %542 = vmatprep.subr.mxu0 0.0
    %543 = vmatpush1.xpose.msra.mxu0 0.0
    %544 = vmatprep.subr.mxu0 0.0
    %545 = vmatpush1.xpose.msra.mxu0 0.0
    %546 = vmatprep.subr.mxu0 0.0
    %547 = vmatpush1.xpose.msra.mxu0 0.0
    %548 = vmatprep.subr.mxu0 0.0
    %549 = vmatpush1.xpose.msra.mxu0 0.0
    %550 = vmatprep.subr.mxu0 0.0
    %551 = vmatpush1.xpose.msra.mxu0 0.0
    %552 = vmatprep.subr.mxu0 0.0
    %553 = vmatpush1.xpose.msra.mxu0 0.0
    %554 = vmatprep.subr.mxu0 0.0
    %555 = vmatpush1.xpose.msra.mxu0 0.0
    %556 = vmatprep.subr.mxu0 0.0
    %557 = vmatpush1.xpose.msra.mxu0 0.0
    %558 = vmatprep.subr.mxu0 0.0
    %559 = vmatpush1.xpose.msra.mxu0 0.0
    %560 = vmatprep.subr.mxu0 0.0
    %561 = vmatpush1.xpose.msra.mxu0 0.0
    %562 = vmatprep.subr.mxu0 0.0
    %563 = vmatpush1.xpose.msra.mxu0 0.0
    %564 = vmatprep.subr.mxu0 0.0
    %565 = vmatpush1.xpose.msra.mxu0 0.0
    %566 = vmatprep.subr.mxu0 0.0
    %567 = vmatpush1.xpose.msra.mxu0 0.0
    %568 = vmatprep.subr.mxu0 0.0
    %569 = vmatpush1.xpose.msra.mxu0 0.0
    %570 = vmatprep.subr.mxu0 0.0
    %571 = vmatpush1.xpose.msra.mxu0 0.0
    %572 = vmatprep.subr.mxu0 0.0
    %573 = vmatpush1.xpose.msra.mxu0 0.0
    %574 = vmatprep.subr.mxu0 0.0
    %575 = vmatpush1.xpose.msra.mxu0 0.0
    %576 = vmatprep.subr.mxu0 0.0
    %577 = vmatpush1.xpose.msra.mxu0 0.0
    %578 = vmatprep.subr.mxu0 0.0
    %579 = vmatpush1.xpose.msra.mxu0 0.0
    %580 = vmatprep.subr.mxu0 0.0
    %581 = vmatpush1.xpose.msra.mxu0 0.0
    %582 = vmatprep.subr.mxu0 0.0
    %583 = vmatpush1.xpose.msra.mxu0 0.0
    %584 = vmatprep.subr.mxu0 0.0
    %585 = vmatpush1.xpose.msra.mxu0 0.0
    %586 = vmatprep.subr.mxu0 0.0
    %587 = vmatpush1.xpose.msra.mxu0 0.0
    %588 = vmatprep.subr.mxu0 0.0
    %589 = vmatpush1.xpose.msra.mxu0 0.0
    %590 = vmatprep.subr.mxu0 0.0
    %591 = vmatpush1.xpose.msra.mxu0 0.0
    %592 = vmatprep.subr.mxu0 0.0
    %593 = vmatpush1.xpose.msra.mxu0 0.0
    %594 = vmatprep.subr.mxu0 0.0
    %595 = vmatpush1.xpose.msra.mxu0 0.0
    %596 = vmatprep.subr.mxu0 0.0
    %597 = vmatpush1.xpose.msra.mxu0 0.0
    %598 = vmatprep.mubr.f32.mxu0 0.0
    %599 = vmatmul.mubr.f32.gmra.mrb[0].mxu0 %v530
    %v600 = vpop.f32.mrb[0].mxu0
    %v601 = vadd.f32 0.0, %v600
    %v602 = vpop.f32.mrb[0].mxu0
    %603 = vdwg.mxu0
    %v604 = vsel %vm184, %v601, -inf
    %v605 = vsel %vm188, %v604, -inf
    %606 = vmax.xlane.f32.xlu0 %v605
    %v607 = vpop.xlane.xlu0 %606
    %v608 = vsub.f32 %v604, %v607
    %v609 = vmul.f32 %v608, 1.442695
    %v610 = vpow.pop %v609
    %v611 = vsel %vm188, %v610, 0.0
    %612 = vadd.xlane.f32.xlu0 %v611
    %v613 = vpop.xlane.xlu0 %612
    %v614 = vrcp.pop %v613
    %v615 = vmul.f32 %v610, %v614
    %616 = vrot.lane.b32.xlu0 %v152, 48
    %v617 = vpop.permute.xlu0 %616
    %v620 = vsel %vm188, %v615, 0
    %622 = vmatprep.subr.mxu0 0.0
    %623 = vmatpush1.msra.mxu0 %v617
    %624 = vmatprep.subr.mxu0 0.0
    %625 = vmatpush1.msra.mxu0 0.0
    %626 = vmatprep.subr.mxu0 0.0
    %627 = vmatpush1.msra.mxu0 0.0
    %628 = vmatprep.subr.mxu0 0.0
    %629 = vmatpush1.msra.mxu0 0.0
    %630 = vmatprep.subr.mxu0 0.0
    %631 = vmatpush1.msra.mxu0 0.0
    %632 = vmatprep.subr.mxu0 0.0
    %633 = vmatpush1.msra.mxu0 0.0
    %634 = vmatprep.subr.mxu0 0.0
    %635 = vmatpush1.msra.mxu0 0.0
    %636 = vmatprep.subr.mxu0 0.0
    %637 = vmatpush1.msra.mxu0 0.0
    %638 = vmatprep.subr.mxu0 0.0
    %639 = vmatpush1.msra.mxu0 0.0
    %640 = vmatprep.subr.mxu0 0.0
    %641 = vmatpush1.msra.mxu0 0.0
    %642 = vmatprep.subr.mxu0 0.0
    %643 = vmatpush1.msra.mxu0 0.0
    %644 = vmatprep.subr.mxu0 0.0
    %645 = vmatpush1.msra.mxu0 0.0
    %646 = vmatprep.subr.mxu0 0.0
    %647 = vmatpush1.msra.mxu0 0.0
    %648 = vmatprep.subr.mxu0 0.0
    %649 = vmatpush1.msra.mxu0 0.0
    %650 = vmatprep.subr.mxu0 0.0
    %651 = vmatpush1.msra.mxu0 0.0
    %652 = vmatprep.subr.mxu0 0.0
    %653 = vmatpush1.msra.mxu0 0.0
    %654 = vmatprep.subr.mxu0 0.0
    %655 = vmatpush1.msra.mxu0 0.0
    %656 = vmatprep.subr.mxu0 0.0
    %657 = vmatpush1.msra.mxu0 0.0
    %658 = vmatprep.subr.mxu0 0.0
    %659 = vmatpush1.msra.mxu0 0.0
    %660 = vmatprep.subr.mxu0 0.0
    %661 = vmatpush1.msra.mxu0 0.0
    %662 = vmatprep.subr.mxu0 0.0
    %663 = vmatpush1.msra.mxu0 0.0
    %664 = vmatprep.subr.mxu0 0.0
    %665 = vmatpush1.msra.mxu0 0.0
    %666 = vmatprep.subr.mxu0 0.0
    %667 = vmatpush1.msra.mxu0 0.0
    %668 = vmatprep.subr.mxu0 0.0
    %669 = vmatpush1.msra.mxu0 0.0
    %670 = vmatprep.subr.mxu0 0.0
    %671 = vmatpush1.msra.mxu0 0.0
    %672 = vmatprep.subr.mxu0 0.0
    %673 = vmatpush1.msra.mxu0 0.0
    %674 = vmatprep.subr.mxu0 0.0
    %675 = vmatpush1.msra.mxu0 0.0
    %676 = vmatprep.subr.mxu0 0.0
    %677 = vmatpush1.msra.mxu0 0.0
    %678 = vmatprep.subr.mxu0 0.0
    %679 = vmatpush1.msra.mxu0 0.0
    %680 = vmatprep.subr.mxu0 0.0
    %681 = vmatpush1.msra.mxu0 0.0
    %682 = vmatprep.subr.mxu0 0.0
    %683 = vmatpush1.msra.mxu0 0.0
    %684 = vmatprep.subr.mxu0 0.0
    %685 = vmatpush1.msra.mxu0 0.0
    %686 = vmatprep.mubr.f32.mxu0 0.0
    %687 = vmatmul.mubr.f32.gmra.mrb[0].mxu0 %v620
    %v688 = vpop.f32.mrb[0].mxu0
    %v689 = vadd.f32 0.0, %v688
    %v690 = vpop.f32.mrb[0].mxu0
    %691 = vdwg.mxu0
    %693 = vrot.lane.b32.xlu0 %v689, 16
    %v694 = vpop.permute.xlu0 %693
    %vm696 = vcmask 195712
    %697 = vst.msk [vmem:[#allocation2] sm:$0xff] %vm696, %v694
    %698 = vrot.lane.b32.xlu0 %v168, 104
    %v699 = vpop.permute.xlu0 %698
    %700 = vrot.lane.b32.xlu0 %v179, 72
    %v701 = vpop.permute.xlu0 %700
    %v702 = vsel %vm188, %v699, 0
    %v704 = vsel %vm188, %v701, 0
    %706 = vmatprep.subr.mxu0 0.0
    %707 = vmatpush1.xpose.msra.mxu0 %v704
    %708 = vmatprep.subr.mxu0 0.0
    %709 = vmatpush1.xpose.msra.mxu0 0.0
    %710 = vmatprep.subr.mxu0 0.0
    %711 = vmatpush1.xpose.msra.mxu0 0.0
    %712 = vmatprep.subr.mxu0 0.0
    %713 = vmatpush1.xpose.msra.mxu0 0.0
    %714 = vmatprep.subr.mxu0 0.0
    %715 = vmatpush1.xpose.msra.mxu0 0.0
    %716 = vmatprep.subr.mxu0 0.0
    %717 = vmatpush1.xpose.msra.mxu0 0.0
    %718 = vmatprep.subr.mxu0 0.0
    %719 = vmatpush1.xpose.msra.mxu0 0.0
    %720 = vmatprep.subr.mxu0 0.0
    %721 = vmatpush1.xpose.msra.mxu0 0.0
    %722 = vmatprep.subr.mxu0 0.0
    %723 = vmatpush1.xpose.msra.mxu0 0.0
    %724 = vmatprep.subr.mxu0 0.0
    %725 = vmatpush1.xpose.msra.mxu0 0.0
    %726 = vmatprep.subr.mxu0 0.0
    %727 = vmatpush1.xpose.msra.mxu0 0.0
    %728 = vmatprep.subr.mxu0 0.0
    %729 = vmatpush1.xpose.msra.mxu0 0.0
    %730 = vmatprep.subr.mxu0 0.0
    %731 = vmatpush1.xpose.msra.mxu0 0.0
    %732 = vmatprep.subr.mxu0 0.0
    %733 = vmatpush1.xpose.msra.mxu0 0.0
    %734 = vmatprep.subr.mxu0 0.0
    %735 = vmatpush1.xpose.msra.mxu0 0.0
    %736 = vmatprep.subr.mxu0 0.0
    %737 = vmatpush1.xpose.msra.mxu0 0.0
    %738 = vmatprep.subr.mxu0 0.0
    %739 = vmatpush1.xpose.msra.mxu0 0.0
    %740 = vmatprep.subr.mxu0 0.0
    %741 = vmatpush1.xpose.msra.mxu0 0.0
    %742 = vmatprep.subr.mxu0 0.0
    %743 = vmatpush1.xpose.msra.mxu0 0.0
    %744 = vmatprep.subr.mxu0 0.0
    %745 = vmatpush1.xpose.msra.mxu0 0.0
    %746 = vmatprep.subr.mxu0 0.0
    %747 = vmatpush1.xpose.msra.mxu0 0.0
    %748 = vmatprep.subr.mxu0 0.0
    %749 = vmatpush1.xpose.msra.mxu0 0.0
    %750 = vmatprep.subr.mxu0 0.0
    %751 = vmatpush1.xpose.msra.mxu0 0.0
    %752 = vmatprep.subr.mxu0 0.0
    %753 = vmatpush1.xpose.msra.mxu0 0.0
    %754 = vmatprep.subr.mxu0 0.0
    %755 = vmatpush1.xpose.msra.mxu0 0.0
    %756 = vmatprep.subr.mxu0 0.0
    %757 = vmatpush1.xpose.msra.mxu0 0.0
    %758 = vmatprep.subr.mxu0 0.0
    %759 = vmatpush1.xpose.msra.mxu0 0.0
    %760 = vmatprep.subr.mxu0 0.0
    %761 = vmatpush1.xpose.msra.mxu0 0.0
    %762 = vmatprep.subr.mxu0 0.0
    %763 = vmatpush1.xpose.msra.mxu0 0.0
    %764 = vmatprep.subr.mxu0 0.0
    %765 = vmatpush1.xpose.msra.mxu0 0.0
    %766 = vmatprep.subr.mxu0 0.0
    %767 = vmatpush1.xpose.msra.mxu0 0.0
    %768 = vmatprep.subr.mxu0 0.0
    %769 = vmatpush1.xpose.msra.mxu0 0.0
    %770 = vmatprep.mubr.f32.mxu0 0.0
    %771 = vmatmul.mubr.f32.gmra.mrb[0].mxu0 %v702
    %v772 = vpop.f32.mrb[0].mxu0
    %v773 = vadd.f32 0.0, %v772
    %v774 = vpop.f32.mrb[0].mxu0
    %775 = vdwg.mxu0
    %v776 = vsel %vm184, %v773, -inf
    %v777 = vsel %vm188, %v776, -inf
    %778 = vmax.xlane.f32.xlu0 %v777
    %v779 = vpop.xlane.xlu0 %778
    %v780 = vsub.f32 %v776, %v779
    %v781 = vmul.f32 %v780, 1.442695
    %v782 = vpow.pop %v781
    %v783 = vsel %vm188, %v782, 0.0
    %784 = vadd.xlane.f32.xlu0 %v783
    %v785 = vpop.xlane.xlu0 %784
    %v786 = vrcp.pop %v785
    %v787 = vmul.f32 %v782, %v786
    %788 = vrot.lane.b32.xlu0 %v152, 40
    %v789 = vpop.permute.xlu0 %788
    %v792 = vsel %vm188, %v787, 0
    %794 = vmatprep.subr.mxu0 0.0
    %795 = vmatpush1.msra.mxu0 %v789
    %796 = vmatprep.subr.mxu0 0.0
    %797 = vmatpush1.msra.mxu0 0.0
    %798 = vmatprep.subr.mxu0 0.0
    %799 = vmatpush1.msra.mxu0 0.0
    %800 = vmatprep.subr.mxu0 0.0
    %801 = vmatpush1.msra.mxu0 0.0
    %802 = vmatprep.subr.mxu0 0.0
    %803 = vmatpush1.msra.mxu0 0.0
    %804 = vmatprep.subr.mxu0 0.0
    %805 = vmatpush1.msra.mxu0 0.0
    %806 = vmatprep.subr.mxu0 0.0
    %807 = vmatpush1.msra.mxu0 0.0
    %808 = vmatprep.subr.mxu0 0.0
    %809 = vmatpush1.msra.mxu0 0.0
    %810 = vmatprep.subr.mxu0 0.0
    %811 = vmatpush1.msra.mxu0 0.0
    %812 = vmatprep.subr.mxu0 0.0
    %813 = vmatpush1.msra.mxu0 0.0
    %814 = vmatprep.subr.mxu0 0.0
    %815 = vmatpush1.msra.mxu0 0.0
    %816 = vmatprep.subr.mxu0 0.0
    %817 = vmatpush1.msra.mxu0 0.0
    %818 = vmatprep.subr.mxu0 0.0
    %819 = vmatpush1.msra.mxu0 0.0
    %820 = vmatprep.subr.mxu0 0.0
    %821 = vmatpush1.msra.mxu0 0.0
    %822 = vmatprep.subr.mxu0 0.0
    %823 = vmatpush1.msra.mxu0 0.0
    %824 = vmatprep.subr.mxu0 0.0
    %825 = vmatpush1.msra.mxu0 0.0
    %826 = vmatprep.subr.mxu0 0.0
    %827 = vmatpush1.msra.mxu0 0.0
    %828 = vmatprep.subr.mxu0 0.0
    %829 = vmatpush1.msra.mxu0 0.0
    %830 = vmatprep.subr.mxu0 0.0
    %831 = vmatpush1.msra.mxu0 0.0
    %832 = vmatprep.subr.mxu0 0.0
    %833 = vmatpush1.msra.mxu0 0.0
    %834 = vmatprep.subr.mxu0 0.0
    %835 = vmatpush1.msra.mxu0 0.0
    %836 = vmatprep.subr.mxu0 0.0
    %837 = vmatpush1.msra.mxu0 0.0
    %838 = vmatprep.subr.mxu0 0.0
    %839 = vmatpush1.msra.mxu0 0.0
    %840 = vmatprep.subr.mxu0 0.0
    %841 = vmatpush1.msra.mxu0 0.0
    %842 = vmatprep.subr.mxu0 0.0
    %843 = vmatpush1.msra.mxu0 0.0
    %844 = vmatprep.subr.mxu0 0.0
    %845 = vmatpush1.msra.mxu0 0.0
    %846 = vmatprep.subr.mxu0 0.0
    %847 = vmatpush1.msra.mxu0 0.0
    %848 = vmatprep.subr.mxu0 0.0
    %849 = vmatpush1.msra.mxu0 0.0
    %850 = vmatprep.subr.mxu0 0.0
    %851 = vmatpush1.msra.mxu0 0.0
    %852 = vmatprep.subr.mxu0 0.0
    %853 = vmatpush1.msra.mxu0 0.0
    %854 = vmatprep.subr.mxu0 0.0
    %855 = vmatpush1.msra.mxu0 0.0
    %856 = vmatprep.subr.mxu0 0.0
    %857 = vmatpush1.msra.mxu0 0.0
    %858 = vmatprep.mubr.f32.mxu0 0.0
    %859 = vmatmul.mubr.f32.gmra.mrb[0].mxu0 %v792
    %v860 = vpop.f32.mrb[0].mxu0
    %v861 = vadd.f32 0.0, %v860
    %v862 = vpop.f32.mrb[0].mxu0
    %863 = vdwg.mxu0
    %865 = vrot.lane.b32.xlu0 %v861, 24
    %v866 = vpop.permute.xlu0 %865
    %vm868 = vcmask 261312
    %869 = vst.msk [vmem:[#allocation2] sm:$0xff] %vm868, %v866
    %v870 = vld [vmem:[#allocation2] sm:$0xff]
    %v871 = vld [vmem:[#allocation8] sm:$0xff]
    %v872 = vld [vmem:[#allocation8 + $0x8] sm:$0xff]
    %v873 = vld [vmem:[#allocation8 + $0x10] sm:$0xff]
    %v874 = vld [vmem:[#allocation8 + $0x18] sm:$0xff]
    %v876 = vsel %vm81, %v870, 0
    %878 = vmatprep.subr.mxu0 0.0
    %879 = vmatpush1.msra.mxu0 %v871
    %880 = vmatprep.subr.mxu0 0.0
    %881 = vmatpush1.msra.mxu0 %v872
    %882 = vmatprep.subr.mxu0 0.0
    %883 = vmatpush1.msra.mxu0 %v873
    %884 = vmatprep.subr.mxu0 0.0
    %885 = vmatpush1.msra.mxu0 %v874
    %886 = vmatprep.subr.mxu0 0.0
    %887 = vmatpush1.msra.mxu0 0.0
    %888 = vmatprep.subr.mxu0 0.0
    %889 = vmatpush1.msra.mxu0 0.0
    %890 = vmatprep.subr.mxu0 0.0
    %891 = vmatpush1.msra.mxu0 0.0
    %892 = vmatprep.subr.mxu0 0.0
    %893 = vmatpush1.msra.mxu0 0.0
    %894 = vmatprep.subr.mxu0 0.0
    %895 = vmatpush1.msra.mxu0 0.0
    %896 = vmatprep.subr.mxu0 0.0
    %897 = vmatpush1.msra.mxu0 0.0
    %898 = vmatprep.subr.mxu0 0.0
    %899 = vmatpush1.msra.mxu0 0.0
    %900 = vmatprep.subr.mxu0 0.0
    %901 = vmatpush1.msra.mxu0 0.0
    %902 = vmatprep.subr.mxu0 0.0
    %903 = vmatpush1.msra.mxu0 0.0
    %904 = vmatprep.subr.mxu0 0.0
    %905 = vmatpush1.msra.mxu0 0.0
    %906 = vmatprep.subr.mxu0 0.0
    %907 = vmatpush1.msra.mxu0 0.0
    %908 = vmatprep.subr.mxu0 0.0
    %909 = vmatpush1.msra.mxu0 0.0
    %910 = vmatprep.subr.mxu0 0.0
    %911 = vmatpush1.msra.mxu0 0.0
    %912 = vmatprep.subr.mxu0 0.0
    %913 = vmatpush1.msra.mxu0 0.0
    %914 = vmatprep.subr.mxu0 0.0
    %915 = vmatpush1.msra.mxu0 0.0
    %916 = vmatprep.subr.mxu0 0.0
    %917 = vmatpush1.msra.mxu0 0.0
    %918 = vmatprep.subr.mxu0 0.0
    %919 = vmatpush1.msra.mxu0 0.0
    %920 = vmatprep.subr.mxu0 0.0
    %921 = vmatpush1.msra.mxu0 0.0
    %922 = vmatprep.subr.mxu0 0.0
    %923 = vmatpush1.msra.mxu0 0.0
    %924 = vmatprep.subr.mxu0 0.0
    %925 = vmatpush1.msra.mxu0 0.0
    %926 = vmatprep.subr.mxu0 0.0
    %927 = vmatpush1.msra.mxu0 0.0
    %928 = vmatprep.subr.mxu0 0.0
    %929 = vmatpush1.msra.mxu0 0.0
    %930 = vmatprep.subr.mxu0 0.0
    %931 = vmatpush1.msra.mxu0 0.0
    %932 = vmatprep.subr.mxu0 0.0
    %933 = vmatpush1.msra.mxu0 0.0
    %934 = vmatprep.subr.mxu0 0.0
    %935 = vmatpush1.msra.mxu0 0.0
    %936 = vmatprep.subr.mxu0 0.0
    %937 = vmatpush1.msra.mxu0 0.0
    %938 = vmatprep.subr.mxu0 0.0
    %939 = vmatpush1.msra.mxu0 0.0
    %940 = vmatprep.subr.mxu0 0.0
    %941 = vmatpush1.msra.mxu0 0.0
    %942 = vmatprep.mubr.f32.mxu0 0.0
    %943 = vmatmul.mubr.f32.gmra.mrb[0].mxu0 %v876
    %v944 = vpop.f32.mrb[0].mxu0
    %v945 = vadd.f32 0.0, %v944
    %v946 = vpop.f32.mrb[0].mxu0
    %947 = vdwg.mxu0
    %948 = vst.msk [vmem:[#allocation11] sm:$0xff] %vm81, %v945
    // Predicated region
    $region38: #{tpu_custom_call.1} parent=1 // pred_check
      _
    $region39: #{tpu_custom_call.1} parent=1 // pred_check_branch
      %950 = sbr.rel (0) target = $region41
    $region40: #{tpu_custom_call.1} parent=1 // pred_region
      %s952 = ssub.s32 128, 128
      %953 = vsyncadd [#allocation5], %s952
      %s955 = sshll.u32 [#allocation11], 4
      %s956 = int_to_ptr.vmem [resolvable:$true] %s955
      %958 = dma.vmem_to_hbm [thread:$0]  %s956, 128, %s5, [#allocation5]
    $region41: #{tpu_custom_call.1} parent=1 // pred_fallthru
      _
    // Predicated region
    $region42: #{tpu_custom_call.1} parent=1 // pred_check
      _
    $region43: #{tpu_custom_call.1} parent=1 // pred_check_branch
      %960 = sbr.rel (0) target = $region45
    $region44: #{tpu_custom_call.1} parent=1 // pred_region
      %961 = dma.done [#allocation5], 128
    $region45: #{tpu_custom_call.1} parent=1 // pred_fallthru
      _
    %962 = vsyncpa [#allocation4], 1
    %963 = vsyncpa [#allocation7], 1
    %964 = vsyncpa [#allocation10], 1
    %965 = vsyncpa [#allocation5], 1

</llo_original>
